<compile_context>
chip_gen: v5e
topology: v5e:2x2
jax: 0.10.0
libtpu: 0.0.40
codegen_flags: <defaults>
</compile_context>

<pallas_src>
import jax
import jax.numpy as jnp
from jax import lax
from jax.experimental import pallas as pl
from jax.experimental.pallas import tpu as pltpu


def _ceil_to(x, m):
    return ((int(x) + m - 1) // m) * m


# ---------------------------------------------------------------------------
# Pallas kernel: fused 3-hidden-layer MLP forward for one batch tile.
# ---------------------------------------------------------------------------
def mlp_kernel(xe_ref, xd_ref, xg_ref,        # activation tiles (bt, de/dd/dg)
               w1_ref, w2_ref, w3_ref,        # hidden-layer weights (bf16, VMEM resident)
               w4r_ref,                       # final weight as a (1, h3) bf16 row
               st_ref,                        # packed scale/shift (2, sum(ceil(h,128))) f32
               b4_ref,                        # final bias scalar, SMEM shape (1,)
               o_ref,                         # (1, bt) transposed output tile
               xcat_ref):                     # (bt, D_in) bf16 scratch (fused concat)
    bf16 = jnp.bfloat16
    f32 = jnp.float32

    de = xe_ref.shape[1]
    dd = xd_ref.shape[1]
    dg = xg_ref.shape[1]
    h_dims = (w1_ref.shape[1], w2_ref.shape[1], w3_ref.shape[1])
    # 128-lane-aligned offsets of each layer's scale/shift segment (static Python ints)
    offs, acc = [], 0
    for hh in h_dims:
        offs.append(acc)
        acc += _ceil_to(hh, 128)

    # --- fused torch.cat: copy the three streams into one bf16 scratch, single full-K dot ---
    xcat_ref[:, 0:de] = xe_ref[...].astype(bf16)
    xcat_ref[:, de:de + dd] = xd_ref[...].astype(bf16)
    xcat_ref[:, de + dd:de + dd + dg] = xg_ref[...].astype(bf16)

    def scale_shift_relu(z, layer):
        off, hh = offs[layer], h_dims[layer]
        s = st_ref[0:1, off:off + hh]     # gamma / sqrt(var + eps)
        t = st_ref[1:2, off:off + hh]     # beta + (bias - mean) * s
        return jnp.maximum(z * s + t, 0.0)

    # --- hidden layer 1: Linear + folded BN(eval)/bias + ReLU --------------------------------
    z = jnp.dot(xcat_ref[...], w1_ref[...], preferred_element_type=f32)
    h = scale_shift_relu(z, 0)
    # --- hidden layer 2 -----------------------------------------------------------------------
    z = jnp.dot(h.astype(bf16), w2_ref[...], preferred_element_type=f32)
    h = scale_shift_relu(z, 1)
    # --- hidden layer 3 -----------------------------------------------------------------------
    z = jnp.dot(h.astype(bf16), w3_ref[...], preferred_element_type=f32)
    h = scale_shift_relu(z, 2)

    # TODO(synk): Dropout is identity in eval mode; training-mode dropout would need
    #             pltpu.prng_seed / pltpu.prng_random_bits and is intentionally omitted.

    # --- final Linear, produced TRANSPOSED so the batch dim sits on lanes ---------------------
    # out[0, b] = sum_k w4r[0, k] * h[b, k]   -> (1, bt) lane-dense store.
    out_row = lax.dot_general(w4r_ref[...], h.astype(bf16),
                              dimension_numbers=(((1,), (1,)), ((), ())),
                              preferred_element_type=f32)
    o_ref[...] = out_row + b4_ref[0]


# ---------------------------------------------------------------------------
# Wrapper: batch tiling (no input padding), BlockSpecs, pallas_call.
# ---------------------------------------------------------------------------
def mlp_forward(text_embedding, demographics, diagnoses, kp, *, batch_tile=4096):
    B = text_embedding.shape[0]
    de = text_embedding.shape[1]
    dd = demographics.shape[1]
    dg = diagnoses.shape[1]
    d_in = de + dd + dg
    h1 = kp["w1"].shape[1]
    h2 = kp["w2"].shape[1]
    h3 = kp["w3"].shape[1]

    # ---- batch tile selection ---------------------------------------------------------------
    # Multiple of 128 so the transposed (1, bt) output block is lane-dense when multi-tile.
    bt = _ceil_to(max(int(batch_tile), 128), 128)
    # Prefer >= 2 tiles when the batch allows it (the batch grid axis is "parallel", so it is
    # sharded across both v7x TensorCores).
    bt = min(bt, _ceil_to(pl.cdiv(B, 2), 128))
    # Keep double-buffered inputs + bf16 concat scratch + resident weights well inside the most
    # conservative default scoped-VMEM budget (16 MiB on v5e); no vmem_limit_bytes needed.
    in_row_bytes = sum(a.dtype.itemsize * a.shape[1]
                       for a in (text_embedding, demographics, diagnoses))
    w_bytes = 2 * sum(int(kp[k].size) * kp[k].dtype.itemsize
                      for k in ("w1", "w2", "w3", "w4r", "st"))
    row_bytes = 2 * in_row_bytes + 2 * d_in            # 2x-buffered inputs + bf16 scratch row
    budget = 12 * 1024 * 1024 - w_bytes
    bt = min(bt, max(128, (budget // row_bytes) // 128 * 128))
    bt = max(bt, 128)
    if bt >= B:                       # single tile: shrink to the (sublane-rounded) batch
        bt = _ceil_to(B, 8)
    num_tiles = pl.cdiv(B, bt)
    n_cols = num_tiles * bt           # output lanes (>= B; tail lanes are sliced off)

    def resident(shape):
        # whole-array block with a constant index map -> stays resident in VMEM across tiles
        return pl.BlockSpec(shape, lambda i: (0,) * len(shape))

    out = pl.pallas_call(
        mlp_kernel,
        out_shape=jax.ShapeDtypeStruct((1, n_cols), jnp.float32),
        grid_spec=pltpu.PrefetchScalarGridSpec(
            num_scalar_prefetch=0,
            grid=(num_tiles,),
            in_specs=[
                pl.BlockSpec((bt, de), lambda i: (i, 0)),   # text embedding tile
                pl.BlockSpec((bt, dd), lambda i: (i, 0)),   # demographics tile
                pl.BlockSpec((bt, dg), lambda i: (i, 0)),   # diagnoses tile
                resident((d_in, h1)),                       # W1
                resident((h1, h2)),                         # W2
                resident((h2, h3)),                         # W3
                resident((1, h3)),                          # W4 row
                resident(tuple(kp["st"].shape)),            # packed scale/shift
                pl.BlockSpec(memory_space=pltpu.MemorySpace.SMEM),  # final bias scalar
            ],
            out_specs=pl.BlockSpec((1, bt), lambda i: (0, i)),
            scratch_shapes=[pltpu.VMEM((bt, d_in), jnp.bfloat16)],
        ),
        compiler_params=pltpu.CompilerParams(
            dimension_semantics=("parallel",)),
    )(text_embedding, demographics, diagnoses,
      kp["w1"], kp["w2"], kp["w3"], kp["w4r"], kp["st"], kp["b4"])

    # keep only the real batch lanes; (B,) -> (B, 1) to match the PyTorch output shape
    return out[0, :B].reshape(B, 1)


# ---------------------------------------------------------------------------
# Deterministic synthetic parameters (PyTorch-like) + host-side folding.
# ---------------------------------------------------------------------------
def make_raw_params(key, dims, eps=1e-5):
    """Unfolded, PyTorch-like parameters.  dims = [D_in, h1, h2, h3, 1]."""
    keys = jax.random.split(key, 32)
    ki = iter(range(32))
    nxt = lambda: keys[next(ki)]
    raw = {"hidden": [], "eps": eps}
    prev = dims[0]
    for d in dims[1:-1]:
        bound = 1.0 / (prev ** 0.5)
        raw["hidden"].append(dict(
            w=jax.random.uniform(nxt(), (prev, d), minval=-bound, maxval=bound, dtype=jnp.float32),
            b=jax.random.uniform(nxt(), (d,), minval=-bound, maxval=bound, dtype=jnp.float32),
            gamma=1.0 + 0.1 * jax.random.normal(nxt(), (d,), dtype=jnp.float32),
            beta=0.1 * jax.random.normal(nxt(), (d,), dtype=jnp.float32),
            mean=0.05 * jax.random.normal(nxt(), (d,), dtype=jnp.float32),
            var=1.0 + 0.1 * jax.random.uniform(nxt(), (d,), dtype=jnp.float32),
        ))
        prev = d
    bound = 1.0 / (prev ** 0.5)
    raw["w_out"] = jax.random.uniform(nxt(), (prev, dims[-1]), minval=-bound, maxval=bound,
                                      dtype=jnp.float32)
    raw["b_out"] = jax.random.uniform(nxt(), (dims[-1],), minval=-bound, maxval=bound,
                                      dtype=jnp.float32)
    return raw


def fold_params(raw, compute_dtype=jnp.bfloat16):
    """Fold BN(eval)+bias into per-layer scale/shift packed at 128-lane-aligned offsets,
    cast matmul weights to bf16, store the final weight as a (1, h3) row and the final
    bias as a (1,) f32 scalar (read from SMEM in-kernel)."""
    eps = raw["eps"]
    hidden = raw["hidden"]
    assert len(hidden) == 3, "kernel is specialized for 3 hidden layers"
    h_dims = [l["w"].shape[1] for l in hidden]
    total = sum(_ceil_to(h, 128) for h in h_dims)
    st = jnp.zeros((2, total), jnp.float32)
    off = 0
    for layer, hh in zip(hidden, h_dims):
        s = layer["gamma"] / jnp.sqrt(layer["var"] + eps)
        t = layer["beta"] + (layer["b"] - layer["mean"]) * s
        st = st.at[0, off:off + hh].set(s)
        st = st.at[1, off:off + hh].set(t)
        off += _ceil_to(hh, 128)
    return {
        "w1": hidden[0]["w"].astype(compute_dtype),
        "w2": hidden[1]["w"].astype(compute_dtype),
        "w3": hidden[2]["w"].astype(compute_dtype),
        "st": st,
        "w4r": raw["w_out"].T.astype(compute_dtype),      # (1, h3)
        "b4": raw["b_out"].astype(jnp.float32),           # (1,)
    }


def mlp_reference(text_embedding, demographics, diagnoses, raw):
    """Pure-JAX f32 reference mirroring the PyTorch module in eval mode."""
    eps = raw["eps"]
    x = jnp.concatenate([text_embedding, demographics, diagnoses], axis=1)
    for layer in raw["hidden"]:
        x = x @ layer["w"] + layer["b"]
        x = layer["gamma"] * (x - layer["mean"]) / jnp.sqrt(layer["var"] + eps) + layer["beta"]
        x = jnp.maximum(x, 0.0)   # Dropout: identity in eval mode
    return x @ raw["w_out"] + raw["b_out"]


if __name__ == "__main__":
    # Small shapes consistent with the module's forward:
    #   text_embedding: (B, 64), demographics: (B, 32), diagnoses: (B, 32)
    #   hidden_dims = [128, 64, 32], output dim = 1
    B = 16
    emb_dim, demo_dim, diag_dim = 64, 32, 32
    hidden_dims = [128, 64, 32]
    D_in = emb_dim + demo_dim + diag_dim

    key = jax.random.PRNGKey(0)
    k_emb, k_demo, k_diag, k_par = jax.random.split(key, 4)

    # f32 inputs (PyTorch default). bf16 activations are also accepted directly by the kernel
    # (the in-kernel .astype(bf16) becomes a no-op), halving input HBM reads at large B.
    text_embedding = jax.random.normal(k_emb, (B, emb_dim), dtype=jnp.float32)
    demographics = jax.random.normal(k_demo, (B, demo_dim), dtype=jnp.float32)
    diagnoses = jax.random.normal(k_diag, (B, diag_dim), dtype=jnp.float32)

    raw = make_raw_params(k_par, [D_in] + hidden_dims + [1])
    kp = fold_params(raw)

    out = mlp_forward(text_embedding, demographics, diagnoses, kp)
    out = jax.block_until_ready(out)

    ref = mlp_reference(text_embedding, demographics, diagnoses, raw)
    assert out.shape == (B, 1), out.shape
    # bf16 matmul operands (f32 accumulate / f32 elementwise) => relaxed tolerance vs f32 ref.
    assert jnp.allclose(out, ref, atol=5e-2, rtol=5e-2), float(jnp.max(jnp.abs(out - ref)))

    print("KERNEL_OK")
</pallas_src>

<mosaic_0001>
module attributes {stable_mosaic.version = 11 : i64} {
  func.func @mlp_kernel(%arg0: i32, %arg1: memref<16x64xf32, #tpu.memory_space<vmem>>, %arg2: memref<16x32xf32, #tpu.memory_space<vmem>>, %arg3: memref<16x32xf32, #tpu.memory_space<vmem>>, %arg4: memref<128x128xbf16, #tpu.memory_space<vmem>>, %arg5: memref<128x64xbf16, #tpu.memory_space<vmem>>, %arg6: memref<64x32xbf16, #tpu.memory_space<vmem>>, %arg7: memref<1x32xbf16, #tpu.memory_space<vmem>>, %arg8: memref<2x384xf32, #tpu.memory_space<vmem>>, %arg9: memref<1xf32, #tpu.memory_space<smem>>, %arg10: memref<1x16xf32, #tpu.memory_space<vmem>>, %arg11: memref<16x128xbf16, #tpu.memory_space<vmem>>) attributes {dimension_semantics = [#tpu.dimension_semantics<parallel>], iteration_bounds = array<i64: 1>, scalar_prefetch = 0 : i64, scratch_operands = 1 : i64, tpu.core_type = #tpu.core_type<tc>, window_params = [{transform_indices = @transform_0, window_bounds = array<i64: 16, 64>}, {transform_indices = @transform_1, window_bounds = array<i64: 16, 32>}, {transform_indices = @transform_2, window_bounds = array<i64: 16, 32>}, {pipeline_mode = #tpu.pipeline_mode<synchronous>, transform_indices = @transform_3, window_bounds = array<i64: 128, 128>}, {pipeline_mode = #tpu.pipeline_mode<synchronous>, transform_indices = @transform_4, window_bounds = array<i64: 128, 64>}, {pipeline_mode = #tpu.pipeline_mode<synchronous>, transform_indices = @transform_5, window_bounds = array<i64: 64, 32>}, {pipeline_mode = #tpu.pipeline_mode<synchronous>, transform_indices = @transform_6, window_bounds = array<i64: 1, 32>}, {pipeline_mode = #tpu.pipeline_mode<synchronous>, transform_indices = @transform_7, window_bounds = array<i64: 2, 384>}, {transform_indices = @transform_8, window_bounds = array<i64: 1>}, {transform_indices = @transform_9, window_bounds = array<i64: 1, 16>}]} {
    %c0 = arith.constant 0 : index
    %c0_0 = arith.constant 0 : index
    %0 = vector.load %arg1[%c0, %c0_0] : memref<16x64xf32, #tpu.memory_space<vmem>>, vector<16x64xf32>
    %1 = arith.truncf %0 : vector<16x64xf32> to vector<16x64xbf16>
    %c0_1 = arith.constant 0 : index
    %c0_2 = arith.constant 0 : index
    %2 = vector.load %arg11[%c0_1, %c0_2] : memref<16x128xbf16, #tpu.memory_space<vmem>>, vector<16x64xbf16>
    tpu.vector_store %arg11[%c0_1, %c0_2], %1 {strides = array<i32>} : memref<16x128xbf16, #tpu.memory_space<vmem>>, vector<16x64xbf16>,
    %c0_3 = arith.constant 0 : index
    %c0_4 = arith.constant 0 : index
    %3 = vector.load %arg2[%c0_3, %c0_4] : memref<16x32xf32, #tpu.memory_space<vmem>>, vector<16x32xf32>
    %4 = arith.truncf %3 : vector<16x32xf32> to vector<16x32xbf16>
    %c0_5 = arith.constant 0 : index
    %c64 = arith.constant 64 : index
    %5 = vector.load %arg11[%c0_5, %c64] : memref<16x128xbf16, #tpu.memory_space<vmem>>, vector<16x32xbf16>
    tpu.vector_store %arg11[%c0_5, %c64], %4 {strides = array<i32>} : memref<16x128xbf16, #tpu.memory_space<vmem>>, vector<16x32xbf16>,
    %c0_6 = arith.constant 0 : index
    %c0_7 = arith.constant 0 : index
    %6 = vector.load %arg3[%c0_6, %c0_7] : memref<16x32xf32, #tpu.memory_space<vmem>>, vector<16x32xf32>
    %7 = arith.truncf %6 : vector<16x32xf32> to vector<16x32xbf16>
    %c0_8 = arith.constant 0 : index
    %c96 = arith.constant 96 : index
    %8 = vector.load %arg11[%c0_8, %c96] : memref<16x128xbf16, #tpu.memory_space<vmem>>, vector<16x32xbf16>
    tpu.vector_store %arg11[%c0_8, %c96], %7 {strides = array<i32>} : memref<16x128xbf16, #tpu.memory_space<vmem>>, vector<16x32xbf16>,
    %c0_9 = arith.constant 0 : index
    %c0_10 = arith.constant 0 : index
    %9 = vector.load %arg11[%c0_9, %c0_10] : memref<16x128xbf16, #tpu.memory_space<vmem>>, vector<16x128xbf16>
    %c0_11 = arith.constant 0 : index
    %c0_12 = arith.constant 0 : index
    %10 = vector.load %arg4[%c0_11, %c0_12] : memref<128x128xbf16, #tpu.memory_space<vmem>>, vector<128x128xbf16>
    %cst = arith.constant dense<0.000000e+00> : vector<16x128xf32>
    %11 = tpu.matmul %9, %10, %cst {dimension_numbers = #tpu.dot_dimension_numbers<[1], [0], [0], [1], [0, 0, 1, 1], [], []>} : vector<16x128xbf16>, vector<128x128xbf16>, vector<16x128xf32> -> vector<16x128xf32>
    %c0_13 = arith.constant 0 : index
    %c0_14 = arith.constant 0 : index
    %12 = vector.load %arg8[%c0_13, %c0_14] : memref<2x384xf32, #tpu.memory_space<vmem>>, vector<1x128xf32>
    %c1 = arith.constant 1 : index
    %c0_15 = arith.constant 0 : index
    %13 = vector.load %arg8[%c1, %c0_15] : memref<2x384xf32, #tpu.memory_space<vmem>>, vector<1x128xf32>
    %14 = vector.broadcast %12 : vector<1x128xf32> to vector<16x128xf32>
    %15 = arith.mulf %11, %14 : vector<16x128xf32>
    %16 = vector.broadcast %13 : vector<1x128xf32> to vector<16x128xf32>
    %17 = arith.addf %15, %16 : vector<16x128xf32>
    %cst_16 = arith.constant 0.000000e+00 : f32
    %18 = vector.broadcast %cst_16 : f32 to vector<16x128xf32>
    %19 = arith.maximumf %17, %18 : vector<16x128xf32>
    %20 = arith.truncf %19 : vector<16x128xf32> to vector<16x128xbf16>
    %c0_17 = arith.constant 0 : index
    %c0_18 = arith.constant 0 : index
    %21 = vector.load %arg5[%c0_17, %c0_18] : memref<128x64xbf16, #tpu.memory_space<vmem>>, vector<128x64xbf16>
    %cst_19 = arith.constant dense<0.000000e+00> : vector<16x64xf32>
    %22 = tpu.matmul %20, %21, %cst_19 {dimension_numbers = #tpu.dot_dimension_numbers<[1], [0], [0], [1], [0, 0, 1, 1], [], []>} : vector<16x128xbf16>, vector<128x64xbf16>, vector<16x64xf32> -> vector<16x64xf32>
    %c0_20 = arith.constant 0 : index
    %c128 = arith.constant 128 : index
    %23 = vector.load %arg8[%c0_20, %c128] : memref<2x384xf32, #tpu.memory_space<vmem>>, vector<1x64xf32>
    %c1_21 = arith.constant 1 : index
    %c128_22 = arith.constant 128 : index
    %24 = vector.load %arg8[%c1_21, %c128_22] : memref<2x384xf32, #tpu.memory_space<vmem>>, vector<1x64xf32>
    %25 = vector.broadcast %23 : vector<1x64xf32> to vector<16x64xf32>
    %26 = arith.mulf %22, %25 : vector<16x64xf32>
    %27 = vector.broadcast %24 : vector<1x64xf32> to vector<16x64xf32>
    %28 = arith.addf %26, %27 : vector<16x64xf32>
    %cst_23 = arith.constant 0.000000e+00 : f32
    %29 = vector.broadcast %cst_23 : f32 to vector<16x64xf32>
    %30 = arith.maximumf %28, %29 : vector<16x64xf32>
    %31 = arith.truncf %30 : vector<16x64xf32> to vector<16x64xbf16>
    %c0_24 = arith.constant 0 : index
    %c0_25 = arith.constant 0 : index
    %32 = vector.load %arg6[%c0_24, %c0_25] : memref<64x32xbf16, #tpu.memory_space<vmem>>, vector<64x32xbf16>
    %cst_26 = arith.constant dense<0.000000e+00> : vector<16x32xf32>
    %33 = tpu.matmul %31, %32, %cst_26 {dimension_numbers = #tpu.dot_dimension_numbers<[1], [0], [0], [1], [0, 0, 1, 1], [], []>} : vector<16x64xbf16>, vector<64x32xbf16>, vector<16x32xf32> -> vector<16x32xf32>
    %c0_27 = arith.constant 0 : index
    %c256 = arith.constant 256 : index
    %34 = vector.load %arg8[%c0_27, %c256] : memref<2x384xf32, #tpu.memory_space<vmem>>, vector<1x32xf32>
    %c1_28 = arith.constant 1 : index
    %c256_29 = arith.constant 256 : index
    %35 = vector.load %arg8[%c1_28, %c256_29] : memref<2x384xf32, #tpu.memory_space<vmem>>, vector<1x32xf32>
    %36 = vector.broadcast %34 : vector<1x32xf32> to vector<16x32xf32>
    %37 = arith.mulf %33, %36 : vector<16x32xf32>
    %38 = vector.broadcast %35 : vector<1x32xf32> to vector<16x32xf32>
    %39 = arith.addf %37, %38 : vector<16x32xf32>
    %cst_30 = arith.constant 0.000000e+00 : f32
    %40 = vector.broadcast %cst_30 : f32 to vector<16x32xf32>
    %41 = arith.maximumf %39, %40 : vector<16x32xf32>
    %c0_31 = arith.constant 0 : index
    %c0_32 = arith.constant 0 : index
    %42 = vector.load %arg7[%c0_31, %c0_32] : memref<1x32xbf16, #tpu.memory_space<vmem>>, vector<1x32xbf16>
    %43 = arith.truncf %41 : vector<16x32xf32> to vector<16x32xbf16>
    %cst_33 = arith.constant dense<0.000000e+00> : vector<1x16xf32>
    %44 = tpu.matmul %42, %43, %cst_33 {dimension_numbers = #tpu.dot_dimension_numbers<[1], [1], [0], [0], [0, 0, 1, 0], [], []>} : vector<1x32xbf16>, vector<16x32xbf16>, vector<1x16xf32> -> vector<1x16xf32>
    %c0_34 = arith.constant 0 : index
    %45 = memref.load %arg9[%c0_34] : memref<1xf32, #tpu.memory_space<smem>>
    %46 = vector.broadcast %45 : f32 to vector<1x16xf32>
    %47 = arith.addf %44, %46 : vector<1x16xf32>
    %c0_35 = arith.constant 0 : index
    %c0_36 = arith.constant 0 : index
    %48 = vector.load %arg10[%c0_35, %c0_36] : memref<1x16xf32, #tpu.memory_space<vmem>>, vector<1x16xf32>
    tpu.vector_store %arg10[%c0_35, %c0_36], %47 {strides = array<i32>} : memref<1x16xf32, #tpu.memory_space<vmem>>, vector<1x16xf32>,
    return
  }
  func.func @transform_0(%arg0: i32) -> (i32, i32) {
    %c0_i32 = arith.constant 0 : i32
    %c0_i32_0 = arith.constant 0 : i32
    return %arg0, %c0_i32 : i32, i32
  }
  func.func @transform_1(%arg0: i32) -> (i32, i32) {
    %c0_i32 = arith.constant 0 : i32
    %c0_i32_0 = arith.constant 0 : i32
    return %arg0, %c0_i32 : i32, i32
  }
  func.func @transform_2(%arg0: i32) -> (i32, i32) {
    %c0_i32 = arith.constant 0 : i32
    %c0_i32_0 = arith.constant 0 : i32
    return %arg0, %c0_i32 : i32, i32
  }
  func.func @transform_3(%arg0: i32) -> (i32, i32) {
    %c0_i32 = arith.constant 0 : i32
    %c0_i32_0 = arith.constant 0 : i32
    %c0_i32_1 = arith.constant 0 : i32
    return %c0_i32, %c0_i32_0 : i32, i32
  }
  func.func @transform_4(%arg0: i32) -> (i32, i32) {
    %c0_i32 = arith.constant 0 : i32
    %c0_i32_0 = arith.constant 0 : i32
    %c0_i32_1 = arith.constant 0 : i32
    return %c0_i32, %c0_i32_0 : i32, i32
  }
  func.func @transform_5(%arg0: i32) -> (i32, i32) {
    %c0_i32 = arith.constant 0 : i32
    %c0_i32_0 = arith.constant 0 : i32
    %c0_i32_1 = arith.constant 0 : i32
    return %c0_i32, %c0_i32_0 : i32, i32
  }
  func.func @transform_6(%arg0: i32) -> (i32, i32) {
    %c0_i32 = arith.constant 0 : i32
    %c0_i32_0 = arith.constant 0 : i32
    %c0_i32_1 = arith.constant 0 : i32
    return %c0_i32, %c0_i32_0 : i32, i32
  }
  func.func @transform_7(%arg0: i32) -> (i32, i32) {
    %c0_i32 = arith.constant 0 : i32
    %c0_i32_0 = arith.constant 0 : i32
    %c0_i32_1 = arith.constant 0 : i32
    return %c0_i32, %c0_i32_0 : i32, i32
  }
  func.func @transform_8(%arg0: i32) -> i32 {
    %c0_i32 = arith.constant 0 : i32
    %c0_i32_0 = arith.constant 0 : i32
    return %c0_i32 : i32
  }
  func.func @transform_9(%arg0: i32) -> (i32, i32) {
    %c0_i32 = arith.constant 0 : i32
    %c0_i32_0 = arith.constant 0 : i32
    return %c0_i32, %arg0 : i32, i32
  }
}

</mosaic_0001>

<llo_original>
// kernel: tpu_custom_call.1
$region0: #{tpu_custom_call.1}
  #allocation0 [shape = 'u32[]', space=smem, size = 0x4, offset = 0x4, fixed_abs, tag = 'smem constant byte address 0x4 - core index']
  #allocation1 [shape = 'u32[72,128]{1,0:T(1,128)}', space=vmem, size = 0x9000, scoped, tag = 'internal scratch']
  #allocation2 [shape = 'bf16[16,128]{1,0:T(8,128)(2,1)}', space=vmem, size = 0x1000, scoped, tag = 'scratch operand']
  #allocation3 [shape = 'f32[1]{0:T(128)S(6)}', space=smem, size = 0x200, scoped, tag = 'scoped memory for tpu_custom_call.1']
  %s0 = inlined_call_operand.vmem [shape: f32[16,64], index: 0, kind: input, shape index: {}]
  %s1 = inlined_call_operand.vmem [shape: f32[16,32], index: 1, kind: input, shape index: {}]
  %s2 = inlined_call_operand.vmem [shape: f32[16,32], index: 2, kind: input, shape index: {}]
  %s3 = inlined_call_operand.vmem [shape: bf16[128,128], index: 3, kind: input, shape index: {}]
  %s4 = inlined_call_operand.vmem [shape: bf16[128,64], index: 4, kind: input, shape index: {}]
  %s5 = inlined_call_operand.vmem [shape: bf16[64,32], index: 5, kind: input, shape index: {}]
  %s6 = inlined_call_operand.vmem [shape: bf16[1,32], index: 6, kind: input, shape index: {}]
  %s7 = inlined_call_operand.vmem [shape: f32[2,384], index: 7, kind: input, shape index: {}]
  %s8 = inlined_call_operand.<no memory space> [shape: f32[1], index: 8, kind: input, shape index: {}]
  %s9 = inlined_call_operand.hbm [shape: f32[1,16], index: 9, kind: output, shape index: {}]
  %s10 = sld [smem:[#allocation0]]
  $region46: #{tpu_custom_call.1} parent=0
    _
  %s12 = ssub.s32 1, %s10
  %s13 = scalar_select 0, %s12, %s10
  %14 = sst [smem:[#allocation3]] %s8
  $region1: #{tpu_custom_call.1} parent=0
    #allocation4 [shape = 'u8[512]{0}', space=vmem, size = 0x400, scoped, tag = 'output window, operand 0, single buffered']
    #allocation5 [shape = 's32[1]{0}', space=sflag, size = 0x4, scoped, tag = 'scoped memory for tpu_custom_call.1']
    %15 = vsyncpa [#allocation5], 0
    // Predicated region
    $region2: #{tpu_custom_call.1} parent=1 // pred_check
      _
    $region3: #{tpu_custom_call.1} parent=1 // pred_check_branch
      %17 = sbr.rel (0) target = $region5
    $region4: #{tpu_custom_call.1} parent=1 // pred_region
      _
    $region5: #{tpu_custom_call.1} parent=1 // pred_fallthru
      _
    // Predicated region
    $region6: #{tpu_custom_call.1} parent=1 // pred_check
      _
    $region7: #{tpu_custom_call.1} parent=1 // pred_check_branch
      %19 = sbr.rel (0) target = $region9
    $region8: #{tpu_custom_call.1} parent=1 // pred_region
      _
    $region9: #{tpu_custom_call.1} parent=1 // pred_fallthru
      _
    // Predicated region
    $region10: #{tpu_custom_call.1} parent=1 // pred_check
      _
    $region11: #{tpu_custom_call.1} parent=1 // pred_check_branch
      %21 = sbr.rel (0) target = $region13
    $region12: #{tpu_custom_call.1} parent=1 // pred_region
      _
    $region13: #{tpu_custom_call.1} parent=1 // pred_fallthru
      _
    // Predicated region
    $region14: #{tpu_custom_call.1} parent=1 // pred_check
      _
    $region15: #{tpu_custom_call.1} parent=1 // pred_check_branch
      %23 = sbr.rel (0) target = $region17
    $region16: #{tpu_custom_call.1} parent=1 // pred_region
      _
    $region17: #{tpu_custom_call.1} parent=1 // pred_fallthru
      _
    // Predicated region
    $region18: #{tpu_custom_call.1} parent=1 // pred_check
      _
    $region19: #{tpu_custom_call.1} parent=1 // pred_check_branch
      %25 = sbr.rel (0) target = $region21
    $region20: #{tpu_custom_call.1} parent=1 // pred_region
      _
    $region21: #{tpu_custom_call.1} parent=1 // pred_fallthru
      _
    // Predicated region
    $region22: #{tpu_custom_call.1} parent=1 // pred_check
      _
    $region23: #{tpu_custom_call.1} parent=1 // pred_check_branch
      %27 = sbr.rel (0) target = $region25
    $region24: #{tpu_custom_call.1} parent=1 // pred_region
      _
    $region25: #{tpu_custom_call.1} parent=1 // pred_fallthru
      _
    // Predicated region
    $region26: #{tpu_custom_call.1} parent=1 // pred_check
      _
    $region27: #{tpu_custom_call.1} parent=1 // pred_check_branch
      %29 = sbr.rel (0) target = $region29
    $region28: #{tpu_custom_call.1} parent=1 // pred_region
      _
    $region29: #{tpu_custom_call.1} parent=1 // pred_fallthru
      _
    // Predicated region
    $region30: #{tpu_custom_call.1} parent=1 // pred_check
      _
    $region31: #{tpu_custom_call.1} parent=1 // pred_check_branch
      %31 = sbr.rel (0) target = $region33
    $region32: #{tpu_custom_call.1} parent=1 // pred_region
      _
    $region33: #{tpu_custom_call.1} parent=1 // pred_fallthru
      _
    // Predicated region
    $region34: #{tpu_custom_call.1} parent=1 // pred_check
      _
    $region35: #{tpu_custom_call.1} parent=1 // pred_check_branch
      %33 = sbr.rel (0) target = $region37
    $region36: #{tpu_custom_call.1} parent=1 // pred_region
      _
    $region37: #{tpu_custom_call.1} parent=1 // pred_fallthru
      _
    %v35 = vld [vmem:[%s0] sm:$0xff]
    %v36 = vld [vmem:[%s0 + $0x8] sm:$0xff]
    %v37 = vpack.c.bf16 %v35, %v35
    %v38 = vpack.c.bf16 %v36, %v36
    %vm39 = vcmask 519168
    %40 = vst.msk [vmem:[#allocation2] sm:$0xf] %vm39, %v37
    %41 = vst.msk [vmem:[#allocation2 + $0x4] sm:$0xf] %vm39, %v38
    %v42 = vld [vmem:[%s1] sm:$0xff]
    %v43 = vld [vmem:[%s1 + $0x8] sm:$0xff]
    %v44 = vpack.c.bf16 %v42, %v42
    %v45 = vpack.c.bf16 %v43, %v43
    %48 = vrot.lane.b32.xlu0 %v44, 64
    %v49 = vpop.permute.xlu0 %48
    %50 = vrot.lane.b32.xlu0 %v45, 64
    %v51 = vpop.permute.xlu0 %50
    %vm54 = vcmask 781824
    %55 = vst.msk [vmem:[#allocation2] sm:$0xf] %vm54, %v49
    %56 = vst.msk [vmem:[#allocation2 + $0x4] sm:$0xf] %vm54, %v51
    %v57 = vld [vmem:[%s2] sm:$0xff]
    %v58 = vld [vmem:[%s2 + $0x8] sm:$0xff]
    %v59 = vpack.c.bf16 %v57, %v57
    %v60 = vpack.c.bf16 %v58, %v58
    %63 = vrot.lane.b32.xlu0 %v59, 96
    %v64 = vpop.permute.xlu0 %63
    %65 = vrot.lane.b32.xlu0 %v60, 96
    %v66 = vpop.permute.xlu0 %65
    %vm69 = vcmask 1044224
    %70 = vst.msk [vmem:[#allocation2] sm:$0xf] %vm69, %v64
    %71 = vst.msk [vmem:[#allocation2 + $0x4] sm:$0xf] %vm69, %v66
    %v72 = vld [vmem:[#allocation2] sm:$0xf]
    %v73 = vld [vmem:[#allocation2 + $0x4] sm:$0xf]
    %v74 = vld [vmem:[%s3] sm:$0xf]
    %v75 = vld [vmem:[%s3 + $0x4] sm:$0xf]
    %v76 = vld [vmem:[%s3 + $0x8] sm:$0xf]
    %v77 = vld [vmem:[%s3 + $0xc] sm:$0xf]
    %v78 = vld [vmem:[%s3 + $0x10] sm:$0xf]
    %v79 = vld [vmem:[%s3 + $0x14] sm:$0xf]
    %v80 = vld [vmem:[%s3 + $0x18] sm:$0xf]
    %v81 = vld [vmem:[%s3 + $0x1c] sm:$0xf]
    %v82 = vld [vmem:[%s3 + $0x20] sm:$0xf]
    %v83 = vld [vmem:[%s3 + $0x24] sm:$0xf]
    %v84 = vld [vmem:[%s3 + $0x28] sm:$0xf]
    %v85 = vld [vmem:[%s3 + $0x2c] sm:$0xf]
    %v86 = vld [vmem:[%s3 + $0x30] sm:$0xf]
    %v87 = vld [vmem:[%s3 + $0x34] sm:$0xf]
    %v88 = vld [vmem:[%s3 + $0x38] sm:$0xf]
    %v89 = vld [vmem:[%s3 + $0x3c] sm:$0xf]
    %v92 = vunpack.c.l.b16 %v72
    %v93 = vunpack.c.l.b16 %v73
    %v94 = vpack.c.b16 %v93, %v92
    %v112 = vunpack.c.l.b16 %v74
    %v113 = vunpack.c.l.b16 %v75
    %v114 = vunpack.c.l.b16 %v76
    %v115 = vunpack.c.l.b16 %v77
    %v116 = vunpack.c.l.b16 %v78
    %v117 = vunpack.c.l.b16 %v79
    %v118 = vunpack.c.l.b16 %v80
    %v119 = vunpack.c.l.b16 %v81
    %v120 = vunpack.c.l.b16 %v82
    %v121 = vunpack.c.l.b16 %v83
    %v122 = vunpack.c.l.b16 %v84
    %v123 = vunpack.c.l.b16 %v85
    %v124 = vunpack.c.l.b16 %v86
    %v125 = vunpack.c.l.b16 %v87
    %v126 = vunpack.c.l.b16 %v88
    %v127 = vunpack.c.l.b16 %v89
    %v128 = vpack.c.b16 %v113, %v112
    %v129 = vpack.c.b16 %v115, %v114
    %v130 = vpack.c.b16 %v117, %v116
    %v131 = vpack.c.b16 %v119, %v118
    %v132 = vpack.c.b16 %v121, %v120
    %v133 = vpack.c.b16 %v123, %v122
    %v134 = vpack.c.b16 %v125, %v124
    %v135 = vpack.c.b16 %v127, %v126
    %144 = vmatpush.bf16.msra.mxu0 %v135
    %145 = vmatpush.bf16.msra.mxu0 %v134
    %146 = vmatpush.bf16.msra.mxu0 %v133
    %147 = vmatpush.bf16.msra.mxu0 %v132
    %148 = vmatpush.bf16.msra.mxu0 %v131
    %149 = vmatpush.bf16.msra.mxu0 %v130
    %150 = vmatpush.bf16.msra.mxu0 %v129
    %151 = vmatpush.bf16.msra.mxu0 %v128
    %152 = vmatmul.bf16.gmra.mxu0 %v94
    %v153 = vpop.f32.mrf.mxu0
    %v154 = vadd.f32 0.0, %v153
    %v155 = vpop.f32.mrf.mxu0
    %v156 = vadd.f32 0.0, %v155
    %157 = vdwg.mxu0
    %v158 = vld [vmem:[%s7] sm:$0x1]
    %v159 = vld [vmem:[%s7 + $0x1] sm:$0x1]
    %v160 = vperm.slane %v158, 0
    %v161 = vmul.f32 %v154, %v160
    %v162 = vmul.f32 %v156, %v160
    %v163 = vperm.slane %v159, 0
    %v164 = vadd.f32 %v161, %v163
    %v165 = vadd.f32 %v162, %v163
    %v166 = vmax.f32 %v164, 0.0
    %v167 = vmax.f32 %v165, 0.0
    %v168 = vpack.c.bf16 %v167, %v166
    %v169 = vld [vmem:[%s4] sm:$0xf]
    %v170 = vld [vmem:[%s4 + $0x4] sm:$0xf]
    %v171 = vld [vmem:[%s4 + $0x8] sm:$0xf]
    %v172 = vld [vmem:[%s4 + $0xc] sm:$0xf]
    %v173 = vld [vmem:[%s4 + $0x10] sm:$0xf]
    %v174 = vld [vmem:[%s4 + $0x14] sm:$0xf]
    %v175 = vld [vmem:[%s4 + $0x18] sm:$0xf]
    %v176 = vld [vmem:[%s4 + $0x1c] sm:$0xf]
    %v177 = vld [vmem:[%s4 + $0x20] sm:$0xf]
    %v178 = vld [vmem:[%s4 + $0x24] sm:$0xf]
    %v179 = vld [vmem:[%s4 + $0x28] sm:$0xf]
    %v180 = vld [vmem:[%s4 + $0x2c] sm:$0xf]
    %v181 = vld [vmem:[%s4 + $0x30] sm:$0xf]
    %v182 = vld [vmem:[%s4 + $0x34] sm:$0xf]
    %v183 = vld [vmem:[%s4 + $0x38] sm:$0xf]
    %v184 = vld [vmem:[%s4 + $0x3c] sm:$0xf]
    %v201 = vunpack.c.l.b16 %v169
    %v202 = vunpack.c.l.b16 %v170
    %v203 = vunpack.c.l.b16 %v171
    %v204 = vunpack.c.l.b16 %v172
    %v205 = vunpack.c.l.b16 %v173
    %v206 = vunpack.c.l.b16 %v174
    %v207 = vunpack.c.l.b16 %v175
    %v208 = vunpack.c.l.b16 %v176
    %v209 = vunpack.c.l.b16 %v177
    %v210 = vunpack.c.l.b16 %v178
    %v211 = vunpack.c.l.b16 %v179
    %v212 = vunpack.c.l.b16 %v180
    %v213 = vunpack.c.l.b16 %v181
    %v214 = vunpack.c.l.b16 %v182
    %v215 = vunpack.c.l.b16 %v183
    %v216 = vunpack.c.l.b16 %v184
    %v217 = vpack.c.b16 %v202, %v201
    %v218 = vpack.c.b16 %v204, %v203
    %v219 = vpack.c.b16 %v206, %v205
    %v220 = vpack.c.b16 %v208, %v207
    %v221 = vpack.c.b16 %v210, %v209
    %v222 = vpack.c.b16 %v212, %v211
    %v223 = vpack.c.b16 %v214, %v213
    %v224 = vpack.c.b16 %v216, %v215
    %233 = vmatpush.bf16.msra.mxu0 %v224
    %234 = vmatpush.bf16.msra.mxu0 %v223
    %235 = vmatpush.bf16.msra.mxu0 %v222
    %236 = vmatpush.bf16.msra.mxu0 %v221
    %237 = vmatpush.bf16.msra.mxu0 %v220
    %238 = vmatpush.bf16.msra.mxu0 %v219
    %239 = vmatpush.bf16.msra.mxu0 %v218
    %240 = vmatpush.bf16.msra.mxu0 %v217
    %241 = vmatmul.bf16.gmra.mxu0 %v168
    %v242 = vpop.f32.mrf.mxu0
    %v243 = vadd.f32 0.0, %v242
    %v244 = vpop.f32.mrf.mxu0
    %v245 = vadd.f32 0.0, %v244
    %246 = vdwg.mxu0
    %v247 = vld [vmem:[%s7 + $0x2] sm:$0x1]
    %v248 = vld [vmem:[%s7 + $0x3] sm:$0x1]
    %v249 = vperm.slane %v247, 0
    %v250 = vmul.f32 %v243, %v249
    %v251 = vmul.f32 %v245, %v249
    %v252 = vperm.slane %v248, 0
    %v253 = vadd.f32 %v250, %v252
    %v254 = vadd.f32 %v251, %v252
    %v255 = vmax.f32 %v253, 0.0
    %v256 = vmax.f32 %v254, 0.0
    %v257 = vpack.c.bf16 %v256, %v255
    %v258 = vld [vmem:[%s5] sm:$0xf]
    %v259 = vld [vmem:[%s5 + $0x4] sm:$0xf]
    %v260 = vld [vmem:[%s5 + $0x8] sm:$0xf]
    %v261 = vld [vmem:[%s5 + $0xc] sm:$0xf]
    %v262 = vld [vmem:[%s5 + $0x10] sm:$0xf]
    %v263 = vld [vmem:[%s5 + $0x14] sm:$0xf]
    %v264 = vld [vmem:[%s5 + $0x18] sm:$0xf]
    %v265 = vld [vmem:[%s5 + $0x1c] sm:$0xf]
    %v274 = vunpack.c.l.b16 %v258
    %v275 = vunpack.c.l.b16 %v259
    %v276 = vunpack.c.l.b16 %v260
    %v277 = vunpack.c.l.b16 %v261
    %v278 = vunpack.c.l.b16 %v262
    %v279 = vunpack.c.l.b16 %v263
    %v280 = vunpack.c.l.b16 %v264
    %v281 = vunpack.c.l.b16 %v265
    %v282 = vpack.c.b16 %v275, %v274
    %v283 = vpack.c.b16 %v277, %v276
    %v284 = vpack.c.b16 %v279, %v278
    %v285 = vpack.c.b16 %v281, %v280
    %vm290 = vcmask 523264
    %v292 = vsel %vm290, %v257, 0
    %294 = vmatpush.bf16.msra.mxu0 0
    %295 = vmatpush.bf16.msra.mxu0 0
    %296 = vmatpush.bf16.msra.mxu0 0
    %297 = vmatpush.bf16.msra.mxu0 0
    %298 = vmatpush.bf16.msra.mxu0 %v285
    %299 = vmatpush.bf16.msra.mxu0 %v284
    %300 = vmatpush.bf16.msra.mxu0 %v283
    %301 = vmatpush.bf16.msra.mxu0 %v282
    %302 = vmatmul.bf16.gmra.mxu0 %v292
    %v303 = vpop.f32.mrf.mxu0
    %v304 = vadd.f32 0.0, %v303
    %v305 = vpop.f32.mrf.mxu0
    %v306 = vadd.f32 0.0, %v305
    %307 = vdwg.mxu0
    %v308 = vld [vmem:[%s7 + $0x4] sm:$0x1]
    %v309 = vld [vmem:[%s7 + $0x5] sm:$0x1]
    %v310 = vperm.slane %v308, 0
    %v311 = vmul.f32 %v304, %v310
    %v312 = vmul.f32 %v306, %v310
    %v313 = vperm.slane %v309, 0
    %v314 = vadd.f32 %v311, %v313
    %v315 = vadd.f32 %v312, %v313
    %v316 = vmax.f32 %v314, 0.0
    %v317 = vmax.f32 %v315, 0.0
    %v318 = vld [vmem:[%s6] sm:$0x1]
    %v319 = vpack.c.bf16 %v317, %v316
    %s320 = sld [smem:[#allocation3]]
    %v321 = vstv %s320
    %vm322 = vcmask 261120
    %v324 = vsel %vm322, %v318, 0
    %v327 = vsel %vm322, %v319, 0
    %329 = vmatpush.bf16.xpose.msra.mxu0 0
    %330 = vmatpush.bf16.xpose.msra.mxu0 0
    %331 = vmatpush.bf16.xpose.msra.mxu0 0
    %332 = vmatpush.bf16.xpose.msra.mxu0 0
    %333 = vmatpush.bf16.xpose.msra.mxu0 0
    %334 = vmatpush.bf16.xpose.msra.mxu0 0
    %335 = vmatpush.bf16.xpose.msra.mxu0 0
    %336 = vmatpush.bf16.xpose.msra.mxu0 %v327
    %337 = vmatmul.bf16.gmra.mxu0 %v324
    %v338 = vpop.f32.mrf.mxu0
    %v339 = vadd.f32 %v321, %v338
    %v340 = vpop.f32.mrf.mxu0
    %341 = vdwg.mxu0
    %vm342 = vcmask 122880
    %343 = vst.msk [vmem:[#allocation4] sm:$0x1] %vm342, %v339
    // Predicated region
    $region38: #{tpu_custom_call.1} parent=1 // pred_check
      _
    $region39: #{tpu_custom_call.1} parent=1 // pred_check_branch
      %345 = sbr.rel (0) target = $region41
    $region40: #{tpu_custom_call.1} parent=1 // pred_region
      %347 = vsyncadd [#allocation5], 0
      %s349 = sshll.u32 [#allocation4], 4
      %s350 = int_to_ptr.vmem [resolvable:$true] %s349
      %s351 = sshll.u32 %s9, 4
      %s352 = int_to_ptr.hbm [resolvable:$true] %s351
      %354 = dma.vmem_to_hbm [thread:$0]  %s350, 16, %s352, [#allocation5]
    $region41: #{tpu_custom_call.1} parent=1 // pred_fallthru
      _
    // Predicated region
    $region42: #{tpu_custom_call.1} parent=1 // pred_check
      _
    $region43: #{tpu_custom_call.1} parent=1 // pred_check_branch
      %356 = sbr.rel (0) target = $region45
    $region44: #{tpu_custom_call.1} parent=1 // pred_region
      %358 = dma.done [#allocation5], 16
    $region45: #{tpu_custom_call.1} parent=1 // pred_fallthru
      _
    %359 = vsyncpa [#allocation5], 1

</llo_original>
